<compile_context>
chip_gen: v7x
topology: tpu7x:2x2x1
jax: 0.10.0
libtpu: 0.0.40
codegen_flags: <defaults>
</compile_context>

<pallas_src>
import functools

import jax
import jax.numpy as jnp
from jax import lax
from jax.experimental import pallas as pl
from jax.experimental.pallas import tpu as pltpu

BN_EPS = 1e-5
LRELU_SLOPE = 0.01
LANE = 128


def _round_up(v, m):
    return (v + m - 1) // m * m


def _make_fused_kernel(n_layers):
    """Build a kernel fusing all `n_layers` (BN + LeakyReLU + Linear) stages.

    Ref layout (positional):
      refs[0]                      : x        (N, C0_pad)          f32
      refs[1 + 2*i], refs[2 + 2*i] : gb_i (2, Ci_pad) f32, wT_i (Ci_pad, Ci1_pad) bf16
      refs[1 + 2*n_layers]         : bias of the last layer (1, Clast_pad) f32
      refs[2 + 2*n_layers]         : output  (N, Clast_pad)
    """

    def kernel(*refs):
        x_ref = refs[0]
        layer_refs = refs[1:1 + 2 * n_layers]
        bias_ref = refs[1 + 2 * n_layers]
        o_ref = refs[2 + 2 * n_layers]

        # Elementwise BN / LeakyReLU math stays f32 (v5e VPU/EUP lack bf16);
        # only the dot operands are bf16 (MXU-native on v5e/v6e/v7x).
        y = x_ref[...].astype(jnp.float32)
        for i in range(n_layers):
            gb = layer_refs[2 * i][...]          # (2, Cin_pad): gamma row, beta row
            wT = layer_refs[2 * i + 1][...]      # (Cin_pad, Cout_pad) bf16
            gamma = gb[0:1, :]
            beta = gb[1:2, :]

            # Two-pass batch statistics (training-mode BN, biased variance).
            # y is fully VMEM-resident, so the second pass is a handful of
            # VPU ops; no E[x^2]-mean^2 cancellation risk.
            mean = jnp.mean(y, axis=0, keepdims=True)
            centered = y - mean
            var = jnp.mean(centered * centered, axis=0, keepdims=True)

            # Fold normalize + affine into per-feature scale / beta shift.
            scale = gamma * lax.rsqrt(var + BN_EPS)      # (1, Cin_pad)
            y = centered * scale + beta

            # LeakyReLU(0.01) == max(y, slope*y) for slope in (0, 1):
            # one vmul + one vmax, no compare/select.
            y = jnp.maximum(y, LRELU_SLOPE * y)

            # Linear on the MXU: bf16 operands, f32 accumulation.
            y = jnp.dot(y.astype(jnp.bfloat16), wT,
                        preferred_element_type=jnp.float32)
            if i == n_layers - 1:                        # bias only on last layer
                y = y + bias_ref[...]

        o_ref[...] = y.astype(o_ref.dtype)

    return kernel


def init_glob_feat_enc_params(key, in_dim, feat_dim):
    """Create (kernel_params, raw_params).

    kernel_params: per-layer dicts with lane-padded, kernel-ready arrays
       gb: (2, Cin_pad) f32  [gamma; beta],  wT: (Cin_pad, Cout_pad) bf16,
       b:  (1, Cout_pad) f32  (last layer only).
    raw_params: unpadded torch-shaped f32 arrays for the pure-JAX reference.
    """
    kernel_params = []
    raw_params = []
    n_layers = len(feat_dim)
    for i in range(n_layers):
        cur = in_dim if i == 0 else feat_dim[i - 1]
        nxt = feat_dim[i]
        cur_p = _round_up(cur, LANE)
        nxt_p = _round_up(nxt, LANE)

        key, kg, kb, kw, kbias = jax.random.split(key, 5)
        gamma = 1.0 + 0.1 * jax.random.normal(kg, (1, cur), jnp.float32)
        beta = 0.1 * jax.random.normal(kb, (1, cur), jnp.float32)
        w = jax.random.normal(kw, (nxt, cur), jnp.float32) / jnp.sqrt(
            jnp.float32(cur)
        )
        has_bias = i == n_layers - 1
        if has_bias:
            bias = 0.1 * jax.random.normal(kbias, (1, nxt), jnp.float32)
        else:
            bias = jnp.zeros((1, nxt), jnp.float32)

        # Zero padding keeps padded feature columns exactly zero end to end.
        gb = jnp.zeros((2, cur_p), jnp.float32)
        gb = gb.at[0, :cur].set(gamma[0])
        gb = gb.at[1, :cur].set(beta[0])
        # Weights stored bf16: MXU-native operand, half the DMA/VMEM footprint.
        wT_pad = (
            jnp.zeros((cur_p, nxt_p), jnp.float32)
            .at[:cur, :nxt].set(w.T)
            .astype(jnp.bfloat16)
        )

        layer = dict(gb=gb, wT=wT_pad)
        if has_bias:
            layer["b"] = jnp.zeros((1, nxt_p), jnp.float32).at[0, :nxt].set(bias[0])
        kernel_params.append(layer)
        raw_params.append(dict(gamma=gamma, beta=beta, w=w, b=bias))
    return kernel_params, raw_params


def _cost_estimate(n, kernel_params):
    """Advisory cost hint for XLA scheduling around the custom call."""
    flops = 0
    transcendentals = 0
    bytes_accessed = 0
    for p in kernel_params:
        cin, cout = p["wT"].shape
        flops += 10 * n * cin                 # BN stats + affine + LeakyReLU
        flops += 2 * n * cin * cout           # matmul
        transcendentals += cin                # rsqrt per feature
        bytes_accessed += p["gb"].size * 4 + p["wT"].size * 2
        if "b" in p:
            flops += n * cout
            bytes_accessed += p["b"].size * 4
    bytes_accessed += n * kernel_params[0]["wT"].shape[0] * 4    # input
    bytes_accessed += n * kernel_params[-1]["wT"].shape[1] * 4   # output
    return pl.CostEstimate(flops=int(flops),
                           transcendentals=int(transcendentals),
                           bytes_accessed=int(bytes_accessed))


def _vmem_limit_bytes(n, kernel_params):
    """Static VMEM residency estimate (+ headroom), clamped to a sane range."""
    total = 0
    for p in kernel_params:
        cin, cout = p["wT"].shape
        total += p["gb"].size * 4 + p["wT"].size * 2
        if "b" in p:
            total += p["b"].size * 4
        total += n * (cin + cout) * 4         # live activations for this layer
    total += n * kernel_params[0]["wT"].shape[0] * 4
    # Headroom for compiler temporaries / buffering; stay under v7x's 64 MiB.
    return int(min(60 * 2**20, max(8 * 2**20, 4 * total)))


@functools.partial(jax.jit, static_argnames=("out_dim",))
def glob_feat_enc_forward(x, kernel_params, *, out_dim):
    """Full GlobFeatEnc stack in a single fused Pallas call."""
    n_layers = len(kernel_params)
    n, c0 = x.shape
    c0_pad = kernel_params[0]["wT"].shape[0]
    if c0_pad != c0:
        x = jnp.pad(x, ((0, 0), (0, c0_pad - c0)))      # lane-dense input

    inputs = [x]
    for p in kernel_params:
        inputs.append(p["gb"])
        inputs.append(p["wT"])
    inputs.append(kernel_params[-1]["b"])               # bias: last layer only

    cout_pad = kernel_params[-1]["wT"].shape[1]
    vmem = pl.BlockSpec(memory_space=pltpu.MemorySpace.VMEM)
    out = pl.pallas_call(
        _make_fused_kernel(n_layers),
        out_shape=jax.ShapeDtypeStruct((n, cout_pad), x.dtype),
        in_specs=[vmem] * len(inputs),
        out_specs=vmem,
        compiler_params=pltpu.CompilerParams(
            vmem_limit_bytes=_vmem_limit_bytes(n, kernel_params)),
        cost_estimate=_cost_estimate(n, kernel_params),
    )(*inputs)
    # TODO(synk): callers that tolerate 128-padded features can take `out`
    # directly and skip this slice (and the input pad) to drop two XLA copies.
    return out[:, :out_dim]


def _reference_forward(x, raw_params, *, bf16_matmul=False):
    """Pure-JAX reference (unpadded, torch training-mode semantics).

    bf16_matmul=True mirrors the kernel's bf16 dot operands for a tight
    numerical check; False is the full-f32 torch-style semantic reference.
    """
    y = x
    n_layers = len(raw_params)
    for i, p in enumerate(raw_params):
        mean = jnp.mean(y, axis=0, keepdims=True)
        var = jnp.mean((y - mean) ** 2, axis=0, keepdims=True)
        yhat = (y - mean) / jnp.sqrt(var + BN_EPS)
        y = yhat * p["gamma"] + p["beta"]
        y = jnp.where(y >= 0, y, LRELU_SLOPE * y)
        if bf16_matmul:
            y = jnp.dot(y.astype(jnp.bfloat16),
                        p["w"].T.astype(jnp.bfloat16),
                        preferred_element_type=jnp.float32)
        else:
            y = y @ p["w"].T
        if i == n_layers - 1:
            y = y + p["b"]
    return y


if __name__ == "__main__":
    key = jax.random.PRNGKey(0)
    kx, kp = jax.random.split(key)

    batch = 8
    in_dim = 16
    feat_dim = (32, 64)

    x = jax.random.normal(kx, (batch, in_dim), jnp.float32)
    kernel_params, raw_params = init_glob_feat_enc_params(kp, in_dim, feat_dim)

    out = glob_feat_enc_forward(x, kernel_params, out_dim=feat_dim[-1])
    out = jax.block_until_ready(out)
    assert out.shape == (batch, feat_dim[-1])

    # Tight check: kernel vs a reference using the same bf16 dot operands
    # (verifies the kernel math itself).
    ref_bf16 = _reference_forward(x, raw_params, bf16_matmul=True)
    err_bf16 = float(jnp.max(jnp.abs(out - ref_bf16)))
    assert err_bf16 < 1e-2, f"kernel vs bf16 reference max err {err_bf16}"

    # Semantic check vs the full-f32 torch-style reference (tolerance loosened
    # for the bf16 MXU operands).
    ref_f32 = _reference_forward(x, raw_params, bf16_matmul=False)
    err_f32 = float(jnp.max(jnp.abs(out - ref_f32)))
    assert err_f32 < 1e-1, f"kernel vs f32 reference max err {err_f32}"

    print("KERNEL_OK")
</pallas_src>

<mosaic_0001>
module attributes {stable_mosaic.version = 11 : i64} {
  func.func @kernel(%arg0: memref<8x128xf32, #tpu.memory_space<vmem>>, %arg1: memref<2x128xf32, #tpu.memory_space<vmem>>, %arg2: memref<128x128xbf16, #tpu.memory_space<vmem>>, %arg3: memref<2x128xf32, #tpu.memory_space<vmem>>, %arg4: memref<128x128xbf16, #tpu.memory_space<vmem>>, %arg5: memref<1x128xf32, #tpu.memory_space<vmem>>, %arg6: memref<8x128xf32, #tpu.memory_space<vmem>>) attributes {dimension_semantics = [], scalar_prefetch = 0 : i64, scratch_operands = 0 : i64, tpu.core_type = #tpu.core_type<tc>} {
    %c0 = arith.constant 0 : index
    %c0_0 = arith.constant 0 : index
    %0 = vector.load %arg0[%c0, %c0_0] : memref<8x128xf32, #tpu.memory_space<vmem>>, vector<8x128xf32>
    %c0_1 = arith.constant 0 : index
    %c0_2 = arith.constant 0 : index
    %1 = vector.load %arg1[%c0_1, %c0_2] : memref<2x128xf32, #tpu.memory_space<vmem>>, vector<2x128xf32>
    %c0_3 = arith.constant 0 : index
    %c0_4 = arith.constant 0 : index
    %2 = vector.load %arg2[%c0_3, %c0_4] : memref<128x128xbf16, #tpu.memory_space<vmem>>, vector<128x128xbf16>
    %3 = vector.extract_strided_slice %1 {offsets = [0, 0], sizes = [1, 128], strides = [1, 1]} : vector<2x128xf32> to vector<1x128xf32>
    %4 = vector.extract_strided_slice %1 {offsets = [1, 0], sizes = [1, 128], strides = [1, 1]} : vector<2x128xf32> to vector<1x128xf32>
    %cst = arith.constant dense<0.000000e+00> : vector<128xf32>
    %5 = vector.multi_reduction <add>, %0, %cst [0] : vector<8x128xf32> to vector<128xf32>
    %6 = vector.shape_cast %5 : vector<128xf32> to vector<1x128xf32>
    %cst_5 = arith.constant 8.000000e+00 : f32
    %7 = vector.broadcast %cst_5 : f32 to vector<1x128xf32>
    %8 = arith.divf %6, %7 : vector<1x128xf32>
    %9 = vector.broadcast %8 : vector<1x128xf32> to vector<8x128xf32>
    %10 = arith.subf %0, %9 : vector<8x128xf32>
    %11 = arith.mulf %10, %10 : vector<8x128xf32>
    %cst_6 = arith.constant dense<0.000000e+00> : vector<128xf32>
    %12 = vector.multi_reduction <add>, %11, %cst_6 [0] : vector<8x128xf32> to vector<128xf32>
    %13 = vector.shape_cast %12 : vector<128xf32> to vector<1x128xf32>
    %cst_7 = arith.constant 8.000000e+00 : f32
    %14 = vector.broadcast %cst_7 : f32 to vector<1x128xf32>
    %15 = arith.divf %13, %14 : vector<1x128xf32>
    %cst_8 = arith.constant 9.99999974E-6 : f32
    %16 = vector.broadcast %cst_8 : f32 to vector<1x128xf32>
    %17 = arith.addf %15, %16 : vector<1x128xf32>
    %18 = math.rsqrt %17 : vector<1x128xf32>
    %19 = arith.mulf %3, %18 : vector<1x128xf32>
    %20 = vector.broadcast %19 : vector<1x128xf32> to vector<8x128xf32>
    %21 = arith.mulf %10, %20 : vector<8x128xf32>
    %22 = vector.broadcast %4 : vector<1x128xf32> to vector<8x128xf32>
    %23 = arith.addf %21, %22 : vector<8x128xf32>
    %cst_9 = arith.constant 0.00999999977 : f32
    %24 = vector.broadcast %cst_9 : f32 to vector<8x128xf32>
    %25 = arith.mulf %24, %23 : vector<8x128xf32>
    %26 = arith.maximumf %23, %25 : vector<8x128xf32>
    %27 = arith.truncf %26 : vector<8x128xf32> to vector<8x128xbf16>
    %cst_10 = arith.constant dense<0.000000e+00> : vector<8x128xf32>
    %28 = tpu.matmul %27, %2, %cst_10 {dimension_numbers = #tpu.dot_dimension_numbers<[1], [0], [0], [1], [0, 0, 1, 1], [], []>} : vector<8x128xbf16>, vector<128x128xbf16>, vector<8x128xf32> -> vector<8x128xf32>
    %c0_11 = arith.constant 0 : index
    %c0_12 = arith.constant 0 : index
    %29 = vector.load %arg3[%c0_11, %c0_12] : memref<2x128xf32, #tpu.memory_space<vmem>>, vector<2x128xf32>
    %c0_13 = arith.constant 0 : index
    %c0_14 = arith.constant 0 : index
    %30 = vector.load %arg4[%c0_13, %c0_14] : memref<128x128xbf16, #tpu.memory_space<vmem>>, vector<128x128xbf16>
    %31 = vector.extract_strided_slice %29 {offsets = [0, 0], sizes = [1, 128], strides = [1, 1]} : vector<2x128xf32> to vector<1x128xf32>
    %32 = vector.extract_strided_slice %29 {offsets = [1, 0], sizes = [1, 128], strides = [1, 1]} : vector<2x128xf32> to vector<1x128xf32>
    %cst_15 = arith.constant dense<0.000000e+00> : vector<128xf32>
    %33 = vector.multi_reduction <add>, %28, %cst_15 [0] : vector<8x128xf32> to vector<128xf32>
    %34 = vector.shape_cast %33 : vector<128xf32> to vector<1x128xf32>
    %cst_16 = arith.constant 8.000000e+00 : f32
    %35 = vector.broadcast %cst_16 : f32 to vector<1x128xf32>
    %36 = arith.divf %34, %35 : vector<1x128xf32>
    %37 = vector.broadcast %36 : vector<1x128xf32> to vector<8x128xf32>
    %38 = arith.subf %28, %37 : vector<8x128xf32>
    %39 = arith.mulf %38, %38 : vector<8x128xf32>
    %cst_17 = arith.constant dense<0.000000e+00> : vector<128xf32>
    %40 = vector.multi_reduction <add>, %39, %cst_17 [0] : vector<8x128xf32> to vector<128xf32>
    %41 = vector.shape_cast %40 : vector<128xf32> to vector<1x128xf32>
    %cst_18 = arith.constant 8.000000e+00 : f32
    %42 = vector.broadcast %cst_18 : f32 to vector<1x128xf32>
    %43 = arith.divf %41, %42 : vector<1x128xf32>
    %cst_19 = arith.constant 9.99999974E-6 : f32
    %44 = vector.broadcast %cst_19 : f32 to vector<1x128xf32>
    %45 = arith.addf %43, %44 : vector<1x128xf32>
    %46 = math.rsqrt %45 : vector<1x128xf32>
    %47 = arith.mulf %31, %46 : vector<1x128xf32>
    %48 = vector.broadcast %47 : vector<1x128xf32> to vector<8x128xf32>
    %49 = arith.mulf %38, %48 : vector<8x128xf32>
    %50 = vector.broadcast %32 : vector<1x128xf32> to vector<8x128xf32>
    %51 = arith.addf %49, %50 : vector<8x128xf32>
    %cst_20 = arith.constant 0.00999999977 : f32
    %52 = vector.broadcast %cst_20 : f32 to vector<8x128xf32>
    %53 = arith.mulf %52, %51 : vector<8x128xf32>
    %54 = arith.maximumf %51, %53 : vector<8x128xf32>
    %55 = arith.truncf %54 : vector<8x128xf32> to vector<8x128xbf16>
    %cst_21 = arith.constant dense<0.000000e+00> : vector<8x128xf32>
    %56 = tpu.matmul %55, %30, %cst_21 {dimension_numbers = #tpu.dot_dimension_numbers<[1], [0], [0], [1], [0, 0, 1, 1], [], []>} : vector<8x128xbf16>, vector<128x128xbf16>, vector<8x128xf32> -> vector<8x128xf32>
    %c0_22 = arith.constant 0 : index
    %c0_23 = arith.constant 0 : index
    %57 = vector.load %arg5[%c0_22, %c0_23] : memref<1x128xf32, #tpu.memory_space<vmem>>, vector<1x128xf32>
    %58 = vector.broadcast %57 : vector<1x128xf32> to vector<8x128xf32>
    %59 = arith.addf %56, %58 : vector<8x128xf32>
    %c0_24 = arith.constant 0 : index
    %c0_25 = arith.constant 0 : index
    %60 = vector.load %arg6[%c0_24, %c0_25] : memref<8x128xf32, #tpu.memory_space<vmem>>, vector<8x128xf32>
    tpu.vector_store %arg6[%c0_24, %c0_25], %59 {strides = array<i32>} : memref<8x128xf32, #tpu.memory_space<vmem>>, vector<8x128xf32>,
    return
  }
}

</mosaic_0001>

<llo_original>
// kernel: glob_feat_enc_forward.1
$region0: #{glob_feat_enc_forward.1}
  #allocation0 [shape = 'u32[]', space=smem, size = 0x4, offset = 0x4, fixed_abs, tag = 'smem constant byte address 0x4 - core index']
  #allocation1 [shape = 'u32[144,128]{1,0:T(1,128)}', space=vmem, size = 0x12000, scoped, tag = 'internal scratch']
  %s0 = inlined_call_operand.vmem [shape: f32[8,128], index: 0, kind: input, shape index: {}]
  %s1 = inlined_call_operand.vmem [shape: f32[2,128], index: 1, kind: input, shape index: {}]
  %s2 = inlined_call_operand.hbm [shape: bf16[128,128], index: 2, kind: input, shape index: {}]
  %s3 = inlined_call_operand.vmem [shape: f32[2,128], index: 3, kind: input, shape index: {}]
  %s4 = inlined_call_operand.hbm [shape: bf16[128,128], index: 4, kind: input, shape index: {}]
  %s5 = inlined_call_operand.vmem [shape: f32[1,128], index: 5, kind: input, shape index: {}]
  %s6 = inlined_call_operand.hbm [shape: f32[8,128], index: 6, kind: output, shape index: {}]
  %s7 = sld [smem:[#allocation0]]
  $region42: #{glob_feat_enc_forward.1} parent=0
    _
  %s9 = ssub.s32 1, %s7
  %s10 = scalar_select 0, %s9, %s7
  $region1: #{glob_feat_enc_forward.1} parent=0
    #allocation2 [shape = 'u8[32768]{0}', space=vmem, size = 0x8000, scoped, tag = 'input window, operand 2, single buffered']
    #allocation3 [shape = 's32[1]{0}', space=sflag, size = 0x4, scoped, tag = 'scoped memory for glob_feat_enc_forward.1']
    #allocation4 [shape = 's32[1]{0}', space=sflag, size = 0x4, scoped, tag = 'scoped memory for glob_feat_enc_forward.1']
    #allocation5 [shape = 'u8[32768]{0}', space=vmem, size = 0x8000, scoped, tag = 'input window, operand 4, single buffered']
    #allocation6 [shape = 's32[1]{0}', space=sflag, size = 0x4, scoped, tag = 'scoped memory for glob_feat_enc_forward.1']
    #allocation7 [shape = 'u8[4096]{0}', space=vmem, size = 0x1000, scoped, tag = 'output window, operand 0, single buffered']
    %11 = vsyncpa [#allocation3], 0
    %12 = vsyncpa [#allocation6], 0
    %13 = vsyncpa [#allocation4], 0
    // Predicated region
    $region2: #{glob_feat_enc_forward.1} parent=1 // pred_check
      _
    $region3: #{glob_feat_enc_forward.1} parent=1 // pred_check_branch
      %15 = sbr.rel (0) target = $region5
    $region4: #{glob_feat_enc_forward.1} parent=1 // pred_region
      _
    $region5: #{glob_feat_enc_forward.1} parent=1 // pred_fallthru
      _
    // Predicated region
    $region6: #{glob_feat_enc_forward.1} parent=1 // pred_check
      _
    $region7: #{glob_feat_enc_forward.1} parent=1 // pred_check_branch
      %17 = sbr.rel (0) target = $region9
    $region8: #{glob_feat_enc_forward.1} parent=1 // pred_region
      _
    $region9: #{glob_feat_enc_forward.1} parent=1 // pred_fallthru
      _
    // Predicated region
    $region10: #{glob_feat_enc_forward.1} parent=1 // pred_check
      _
    $region11: #{glob_feat_enc_forward.1} parent=1 // pred_check_branch
      %19 = sbr.rel (0) target = $region13
    $region12: #{glob_feat_enc_forward.1} parent=1 // pred_region
      %s21 = ssub.s32 1024, 1024
      %22 = vsyncadd [#allocation3], %s21
      %s23 = sshll.u32 [#allocation2], 4
      %s24 = int_to_ptr.vmem [resolvable:$true] %s23
      %29 = dma.hbm_to_vmem [thread:$0]  %s2, 1024, %s24, [#allocation3], 64, 64, 4
    $region13: #{glob_feat_enc_forward.1} parent=1 // pred_fallthru
      _
    // Predicated region
    $region14: #{glob_feat_enc_forward.1} parent=1 // pred_check
      _
    $region15: #{glob_feat_enc_forward.1} parent=1 // pred_check_branch
      %31 = sbr.rel (0) target = $region17
    $region16: #{glob_feat_enc_forward.1} parent=1 // pred_region
      _
    $region17: #{glob_feat_enc_forward.1} parent=1 // pred_fallthru
      _
    // Predicated region
    $region18: #{glob_feat_enc_forward.1} parent=1 // pred_check
      _
    $region19: #{glob_feat_enc_forward.1} parent=1 // pred_check_branch
      %33 = sbr.rel (0) target = $region21
    $region20: #{glob_feat_enc_forward.1} parent=1 // pred_region
      %s35 = ssub.s32 1024, 1024
      %36 = vsyncadd [#allocation6], %s35
      %s37 = sshll.u32 [#allocation5], 4
      %s38 = int_to_ptr.vmem [resolvable:$true] %s37
      %43 = dma.hbm_to_vmem [thread:$0]  %s4, 1024, %s38, [#allocation6], 64, 64, 4
    $region21: #{glob_feat_enc_forward.1} parent=1 // pred_fallthru
      _
    // Predicated region
    $region22: #{glob_feat_enc_forward.1} parent=1 // pred_check
      _
    $region23: #{glob_feat_enc_forward.1} parent=1 // pred_check_branch
      %45 = sbr.rel (0) target = $region25
    $region24: #{glob_feat_enc_forward.1} parent=1 // pred_region
      _
    $region25: #{glob_feat_enc_forward.1} parent=1 // pred_fallthru
      _
    // Predicated region
    $region26: #{glob_feat_enc_forward.1} parent=1 // pred_check
      _
    $region27: #{glob_feat_enc_forward.1} parent=1 // pred_check_branch
      %47 = sbr.rel (0) target = $region29
    $region28: #{glob_feat_enc_forward.1} parent=1 // pred_region
      %48 = dma.done [#allocation3], 1024
    $region29: #{glob_feat_enc_forward.1} parent=1 // pred_fallthru
      _
    // Predicated region
    $region30: #{glob_feat_enc_forward.1} parent=1 // pred_check
      _
    $region31: #{glob_feat_enc_forward.1} parent=1 // pred_check_branch
      %50 = sbr.rel (0) target = $region33
    $region32: #{glob_feat_enc_forward.1} parent=1 // pred_region
      %51 = dma.done [#allocation6], 1024
    $region33: #{glob_feat_enc_forward.1} parent=1 // pred_fallthru
      _
    %v53 = vld [vmem:[%s0] sm:$0xff]
    %v54 = vld [vmem:[%s1] sm:$0x3]
    %v55 = vld [vmem:[#allocation2] sm:$0xf]
    %v56 = vld [vmem:[#allocation2 + $0x4] sm:$0xf]
    %v57 = vld [vmem:[#allocation2 + $0x8] sm:$0xf]
    %v58 = vld [vmem:[#allocation2 + $0xc] sm:$0xf]
    %v59 = vld [vmem:[#allocation2 + $0x10] sm:$0xf]
    %v60 = vld [vmem:[#allocation2 + $0x14] sm:$0xf]
    %v61 = vld [vmem:[#allocation2 + $0x18] sm:$0xf]
    %v62 = vld [vmem:[#allocation2 + $0x1c] sm:$0xf]
    %v63 = vld [vmem:[#allocation2 + $0x20] sm:$0xf]
    %v64 = vld [vmem:[#allocation2 + $0x24] sm:$0xf]
    %v65 = vld [vmem:[#allocation2 + $0x28] sm:$0xf]
    %v66 = vld [vmem:[#allocation2 + $0x2c] sm:$0xf]
    %v67 = vld [vmem:[#allocation2 + $0x30] sm:$0xf]
    %v68 = vld [vmem:[#allocation2 + $0x34] sm:$0xf]
    %v69 = vld [vmem:[#allocation2 + $0x38] sm:$0xf]
    %v70 = vld [vmem:[#allocation2 + $0x3c] sm:$0xf]
    %v71 = vrot.slane %v53, 4
    %v72 = vadd.f32 %v53, %v71
    %v73 = vrot.slane %v72, 2
    %v74 = vadd.f32 %v72, %v73
    %v75 = vrot.slane %v74, 1
    %v76 = vadd.f32 %v74, %v75
    %v77 = vrcp.pop 8.0
    %v78 = vmul.f32 %v76, %v77
    %v79 = vsub.f32 %v53, %v78
    %v80 = vmul.f32 %v79, %v79
    %v81 = vrot.slane %v80, 4
    %v82 = vadd.f32 %v80, %v81
    %v83 = vrot.slane %v82, 2
    %v84 = vadd.f32 %v82, %v83
    %v85 = vrot.slane %v84, 1
    %v86 = vadd.f32 %v84, %v85
    %v87 = vmul.f32 %v86, %v77
    %v88 = vadd.f32 %v87, 1e-05
    %v89 = vrsqrt.pop %v88
    %v90 = vmul.f32 %v54, %v89
    %v91 = vlaneseq
    %v92 = vshrl.u32 %v91, 7
    %v93 = vsub.s32 0, %v92
    %v94 = vrot.slane %v90, %v93
    %v95 = vmul.f32 %v79, %v94
    %v96 = vlaneseq
    %v97 = vshrl.u32 %v96, 7
    %v98 = vsub.s32 1, %v97
    %v99 = vrot.slane %v54, %v98
    %v100 = vadd.f32 %v95, %v99
    %v101 = vmul.f32 %v100, 0.01
    %v102 = vmax.f32 %v100, %v101
    %v103 = vpack.c.bf16 %v102, %v102
    %v120 = vunpack.c.l.b16 %v55
    %v121 = vunpack.c.l.b16 %v56
    %v122 = vunpack.c.l.b16 %v57
    %v123 = vunpack.c.l.b16 %v58
    %v124 = vunpack.c.l.b16 %v59
    %v125 = vunpack.c.l.b16 %v60
    %v126 = vunpack.c.l.b16 %v61
    %v127 = vunpack.c.l.b16 %v62
    %v128 = vunpack.c.l.b16 %v63
    %v129 = vunpack.c.l.b16 %v64
    %v130 = vunpack.c.l.b16 %v65
    %v131 = vunpack.c.l.b16 %v66
    %v132 = vunpack.c.l.b16 %v67
    %v133 = vunpack.c.l.b16 %v68
    %v134 = vunpack.c.l.b16 %v69
    %v135 = vunpack.c.l.b16 %v70
    %v136 = vpack.c.b16 %v121, %v120
    %v137 = vpack.c.b16 %v123, %v122
    %v138 = vpack.c.b16 %v125, %v124
    %v139 = vpack.c.b16 %v127, %v126
    %v140 = vpack.c.b16 %v129, %v128
    %v141 = vpack.c.b16 %v131, %v130
    %v142 = vpack.c.b16 %v133, %v132
    %v143 = vpack.c.b16 %v135, %v134
    %152 = vmatprep.subr.bf16.mxu0 0
    %153 = vmatpush1.bf16.msra.mxu0 %v136
    %154 = vmatprep.subr.bf16.mxu0 0
    %155 = vmatpush1.bf16.msra.mxu0 %v137
    %156 = vmatprep.subr.bf16.mxu0 0
    %157 = vmatpush1.bf16.msra.mxu0 %v138
    %158 = vmatprep.subr.bf16.mxu0 0
    %159 = vmatpush1.bf16.msra.mxu0 %v139
    %160 = vmatprep.subr.bf16.mxu0 0
    %161 = vmatpush1.bf16.msra.mxu0 %v140
    %162 = vmatprep.subr.bf16.mxu0 0
    %163 = vmatpush1.bf16.msra.mxu0 %v141
    %164 = vmatprep.subr.bf16.mxu0 0
    %165 = vmatpush1.bf16.msra.mxu0 %v142
    %166 = vmatprep.subr.bf16.mxu0 0
    %167 = vmatpush1.bf16.msra.mxu0 %v143
    %168 = vmatprep.subr.bf16.mxu0 0
    %169 = vmatpush1.bf16.msra.mxu0 0
    %170 = vmatprep.subr.bf16.mxu0 0
    %171 = vmatpush1.bf16.msra.mxu0 0
    %172 = vmatprep.subr.bf16.mxu0 0
    %173 = vmatpush1.bf16.msra.mxu0 0
    %174 = vmatprep.subr.bf16.mxu0 0
    %175 = vmatpush1.bf16.msra.mxu0 0
    %176 = vmatprep.subr.bf16.mxu0 0
    %177 = vmatpush1.bf16.msra.mxu0 0
    %178 = vmatprep.subr.bf16.mxu0 0
    %179 = vmatpush1.bf16.msra.mxu0 0
    %180 = vmatprep.subr.bf16.mxu0 0
    %181 = vmatpush1.bf16.msra.mxu0 0
    %182 = vmatprep.subr.bf16.mxu0 0
    %183 = vmatpush1.bf16.msra.mxu0 0
    %184 = vmatprep.mubr.bf16.mxu0 0
    %185 = vmatmul.mubr.bf16.gmra.mrb[0].mxu0 %v103
    %v186 = vpop.f32.mrb[0].mxu0
    %v187 = vadd.f32 0.0, %v186
    %v188 = vpop.f32.mrb[0].mxu0
    %v189 = vpop.f32.mrb[0].mxu0
    %v190 = vpop.f32.mrb[0].mxu0
    %191 = vdwg.mxu0
    %v192 = vld [vmem:[%s3] sm:$0x3]
    %v193 = vld [vmem:[#allocation5] sm:$0xf]
    %v194 = vld [vmem:[#allocation5 + $0x4] sm:$0xf]
    %v195 = vld [vmem:[#allocation5 + $0x8] sm:$0xf]
    %v196 = vld [vmem:[#allocation5 + $0xc] sm:$0xf]
    %v197 = vld [vmem:[#allocation5 + $0x10] sm:$0xf]
    %v198 = vld [vmem:[#allocation5 + $0x14] sm:$0xf]
    %v199 = vld [vmem:[#allocation5 + $0x18] sm:$0xf]
    %v200 = vld [vmem:[#allocation5 + $0x1c] sm:$0xf]
    %v201 = vld [vmem:[#allocation5 + $0x20] sm:$0xf]
    %v202 = vld [vmem:[#allocation5 + $0x24] sm:$0xf]
    %v203 = vld [vmem:[#allocation5 + $0x28] sm:$0xf]
    %v204 = vld [vmem:[#allocation5 + $0x2c] sm:$0xf]
    %v205 = vld [vmem:[#allocation5 + $0x30] sm:$0xf]
    %v206 = vld [vmem:[#allocation5 + $0x34] sm:$0xf]
    %v207 = vld [vmem:[#allocation5 + $0x38] sm:$0xf]
    %v208 = vld [vmem:[#allocation5 + $0x3c] sm:$0xf]
    %v209 = vrot.slane %v187, 4
    %v210 = vadd.f32 %v187, %v209
    %v211 = vrot.slane %v210, 2
    %v212 = vadd.f32 %v210, %v211
    %v213 = vrot.slane %v212, 1
    %v214 = vadd.f32 %v212, %v213
    %v215 = vmul.f32 %v214, %v77
    %v216 = vsub.f32 %v187, %v215
    %v217 = vmul.f32 %v216, %v216
    %v218 = vrot.slane %v217, 4
    %v219 = vadd.f32 %v217, %v218
    %v220 = vrot.slane %v219, 2
    %v221 = vadd.f32 %v219, %v220
    %v222 = vrot.slane %v221, 1
    %v223 = vadd.f32 %v221, %v222
    %v224 = vmul.f32 %v223, %v77
    %v225 = vadd.f32 %v224, 1e-05
    %v226 = vrsqrt.pop %v225
    %v227 = vmul.f32 %v192, %v226
    %v228 = vlaneseq
    %v229 = vshrl.u32 %v228, 7
    %v230 = vsub.s32 0, %v229
    %v231 = vrot.slane %v227, %v230
    %v232 = vmul.f32 %v216, %v231
    %v233 = vlaneseq
    %v234 = vshrl.u32 %v233, 7
    %v235 = vsub.s32 1, %v234
    %v236 = vrot.slane %v192, %v235
    %v237 = vadd.f32 %v232, %v236
    %v238 = vmul.f32 %v237, 0.01
    %v239 = vmax.f32 %v237, %v238
    %v240 = vpack.c.bf16 %v239, %v239
    %v241 = vld [vmem:[%s5] sm:$0x1]
    %v243 = vlaneseq
    %v244 = vshrl.u32 %v243, 7
    %v245 = vsub.s32 0, %v244
    %v246 = vrot.slane %v241, %v245
    %v264 = vunpack.c.l.b16 %v193
    %v265 = vunpack.c.l.b16 %v194
    %v266 = vunpack.c.l.b16 %v195
    %v267 = vunpack.c.l.b16 %v196
    %v268 = vunpack.c.l.b16 %v197
    %v269 = vunpack.c.l.b16 %v198
    %v270 = vunpack.c.l.b16 %v199
    %v271 = vunpack.c.l.b16 %v200
    %v272 = vunpack.c.l.b16 %v201
    %v273 = vunpack.c.l.b16 %v202
    %v274 = vunpack.c.l.b16 %v203
    %v275 = vunpack.c.l.b16 %v204
    %v276 = vunpack.c.l.b16 %v205
    %v277 = vunpack.c.l.b16 %v206
    %v278 = vunpack.c.l.b16 %v207
    %v279 = vunpack.c.l.b16 %v208
    %v280 = vpack.c.b16 %v265, %v264
    %v281 = vpack.c.b16 %v267, %v266
    %v282 = vpack.c.b16 %v269, %v268
    %v283 = vpack.c.b16 %v271, %v270
    %v284 = vpack.c.b16 %v273, %v272
    %v285 = vpack.c.b16 %v275, %v274
    %v286 = vpack.c.b16 %v277, %v276
    %v287 = vpack.c.b16 %v279, %v278
    %296 = vmatprep.subr.bf16.mxu0 0
    %297 = vmatpush1.bf16.msra.mxu0 %v280
    %298 = vmatprep.subr.bf16.mxu0 0
    %299 = vmatpush1.bf16.msra.mxu0 %v281
    %300 = vmatprep.subr.bf16.mxu0 0
    %301 = vmatpush1.bf16.msra.mxu0 %v282
    %302 = vmatprep.subr.bf16.mxu0 0
    %303 = vmatpush1.bf16.msra.mxu0 %v283
    %304 = vmatprep.subr.bf16.mxu0 0
    %305 = vmatpush1.bf16.msra.mxu0 %v284
    %306 = vmatprep.subr.bf16.mxu0 0
    %307 = vmatpush1.bf16.msra.mxu0 %v285
    %308 = vmatprep.subr.bf16.mxu0 0
    %309 = vmatpush1.bf16.msra.mxu0 %v286
    %310 = vmatprep.subr.bf16.mxu0 0
    %311 = vmatpush1.bf16.msra.mxu0 %v287
    %312 = vmatprep.subr.bf16.mxu0 0
    %313 = vmatpush1.bf16.msra.mxu0 0
    %314 = vmatprep.subr.bf16.mxu0 0
    %315 = vmatpush1.bf16.msra.mxu0 0
    %316 = vmatprep.subr.bf16.mxu0 0
    %317 = vmatpush1.bf16.msra.mxu0 0
    %318 = vmatprep.subr.bf16.mxu0 0
    %319 = vmatpush1.bf16.msra.mxu0 0
    %320 = vmatprep.subr.bf16.mxu0 0
    %321 = vmatpush1.bf16.msra.mxu0 0
    %322 = vmatprep.subr.bf16.mxu0 0
    %323 = vmatpush1.bf16.msra.mxu0 0
    %324 = vmatprep.subr.bf16.mxu0 0
    %325 = vmatpush1.bf16.msra.mxu0 0
    %326 = vmatprep.subr.bf16.mxu0 0
    %327 = vmatpush1.bf16.msra.mxu0 0
    %328 = vmatprep.mubr.bf16.mxu0 0
    %329 = vmatmul.mubr.bf16.gmra.mrb[0].mxu0 %v240
    %v330 = vpop.f32.mrb[0].mxu0
    %v331 = vadd.f32 %v246, %v330
    %v332 = vpop.f32.mrb[0].mxu0
    %v333 = vpop.f32.mrb[0].mxu0
    %v334 = vpop.f32.mrb[0].mxu0
    %335 = vdwg.mxu0
    %336 = vst [vmem:[#allocation7] sm:$0xff] %v331
    // Predicated region
    $region34: #{glob_feat_enc_forward.1} parent=1 // pred_check
      _
    $region35: #{glob_feat_enc_forward.1} parent=1 // pred_check_branch
      %338 = sbr.rel (0) target = $region37
    $region36: #{glob_feat_enc_forward.1} parent=1 // pred_region
      %s340 = ssub.s32 128, 128
      %341 = vsyncadd [#allocation4], %s340
      %s343 = sshll.u32 [#allocation7], 4
      %s344 = int_to_ptr.vmem [resolvable:$true] %s343
      %346 = dma.vmem_to_hbm [thread:$0]  %s344, 128, %s6, [#allocation4]
    $region37: #{glob_feat_enc_forward.1} parent=1 // pred_fallthru
      _
    // Predicated region
    $region38: #{glob_feat_enc_forward.1} parent=1 // pred_check
      _
    $region39: #{glob_feat_enc_forward.1} parent=1 // pred_check_branch
      %348 = sbr.rel (0) target = $region41
    $region40: #{glob_feat_enc_forward.1} parent=1 // pred_region
      %349 = dma.done [#allocation4], 128
    $region41: #{glob_feat_enc_forward.1} parent=1 // pred_fallthru
      _
    %350 = vsyncpa [#allocation3], 1
    %351 = vsyncpa [#allocation6], 1
    %352 = vsyncpa [#allocation4], 1

</llo_original>
